<compile_context>
chip_gen: v6e
topology: v6e:2x2x1
jax: 0.10.0
libtpu: 0.0.40
codegen_flags: <defaults>
</compile_context>

<pallas_src>
import functools

import jax
import jax.numpy as jnp
import numpy as np
from jax import lax
from jax.experimental import pallas as pl
from jax.experimental.pallas import tpu as pltpu

EPSILON = 1e-5


# --------------------------------------------------------------------------- #
# Kernel
# --------------------------------------------------------------------------- #
def mlp_block_kernel(x_ref, w2_ref, m_ref, bias2_ref, alpha_ref, beta_ref, o_ref):
    """One grid step = one block of `bt` batch rows, everything lane-dense.

    x_ref:     (bt, D)   flattened input rows (D = P*S)
    w2_ref:    (D, 2D)   fused [ kron(I_P, W^T) | kron(I_P, W^T) @ m_avg ]
    m_ref:     (D, D)    averaging matrix kron(ones(P,P)/P, I_S)
    bias2_ref: (1, 2D)   fused [ bias_flat | bias_flat @ m_avg ]
    alpha_ref: (1, D)    LN scale repeated over S
    beta_ref:  (1, D)    LN shift repeated over S
    o_ref:     (bt, D)   output rows
    """
    D = m_ref.shape[0]

    x = x_ref[...].astype(jnp.float32)                       # (bt, D)

    # Fused TemporalFC + mean-over-P: one MXU pass producing [y | mean].
    ym = jnp.dot(x, w2_ref[...], preferred_element_type=jnp.float32) + bias2_ref[...]
    y = ym[:, :D]                                             # (bt, D)
    mean = ym[:, D:]                                          # (bt, D), mean broadcast over P

    # Variance over P (reduce + broadcast back) via one more MXU matmul.
    diff = y - mean
    var = jnp.dot(diff * diff, m_ref[...], preferred_element_type=jnp.float32)

    # Normalize (rsqrt -> EUP), affine, residual. Lane-dense store.
    y_n = diff * lax.rsqrt(var + EPSILON)
    y_n = y_n * alpha_ref[...] + beta_ref[...]
    o_ref[...] = (x + y_n).astype(o_ref.dtype)


# --------------------------------------------------------------------------- #
# Block-size selection: ~2 MiB blocks, >=2 grid steps when possible, pad batch.
# --------------------------------------------------------------------------- #
def _pick_block_batch(B, D, itemsize, target_block_bytes=2 << 20):
    """Rows per block: ~target_block_bytes per block, multiple of 8, >=2 steps
    whenever the batch allows it (v7x megacore), padding instead of divisor search."""
    rows = max(8, (target_block_bytes // max(1, D * itemsize)) // 8 * 8)
    n_steps = max(1, -(-B // rows))
    if B > 8:
        n_steps = max(n_steps, 2)          # let megacore shard the parallel axis
    rows = -(-B // n_steps)                # rebalance to minimize padding
    rows = max(8, -(-rows // 8) * 8)       # multiple of 8 (sublane alignment)
    return rows


# --------------------------------------------------------------------------- #
# Parameter precompute (done once at parameter-load time, not per call).
# --------------------------------------------------------------------------- #
def prepare_params(w, bias, alpha, beta, P, S):
    """w: (S, S) torch Linear weight; bias: (S,); alpha/beta: (1, P, 1)."""
    f32 = jnp.float32
    D = P * S
    w_big = jnp.kron(jnp.eye(P, dtype=f32), w.astype(f32).T)                       # (D, D)
    m_avg = jnp.kron(jnp.full((P, P), 1.0 / P, dtype=f32), jnp.eye(S, dtype=f32))  # (D, D)
    bias_flat = jnp.tile(bias.astype(f32).reshape(S), (P,)).reshape(1, D)
    alpha_flat = jnp.repeat(alpha.astype(f32).reshape(P), S).reshape(1, D)
    beta_flat = jnp.repeat(beta.astype(f32).reshape(P), S).reshape(1, D)

    # Fuse FC + mean: [y | mean] = x @ W2 + bias2.
    w2 = jnp.concatenate([w_big, w_big @ m_avg], axis=1)                            # (D, 2D)
    bias2 = jnp.concatenate([bias_flat, bias_flat @ m_avg], axis=1)                 # (1, 2D)

    return {"w2": w2, "m_avg": m_avg, "bias2": bias2,
            "alpha": alpha_flat, "beta": beta_flat}


# --------------------------------------------------------------------------- #
# Forward pass
# --------------------------------------------------------------------------- #
@jax.jit
def mlp_block_apply(x, params):
    """x: (B, P, S) -> (B, P, S), computing x + CustomLayerNorm_axis1(TemporalFC(x))."""
    B, P, S = x.shape
    D = P * S

    x_flat = x.reshape(B, D)                                   # contiguous, free in XLA
    bt = _pick_block_batch(B, D, x.dtype.itemsize)
    n_blocks = pl.cdiv(B, bt)
    B_pad = n_blocks * bt
    if B_pad != B:
        x_flat = jnp.pad(x_flat, ((0, B_pad - B), (0, 0)))     # padded rows computed then dropped

    out_flat = pl.pallas_call(
        mlp_block_kernel,
        out_shape=jax.ShapeDtypeStruct((B_pad, D), x.dtype),
        grid_spec=pltpu.PrefetchScalarGridSpec(
            num_scalar_prefetch=0,
            grid=(n_blocks,),
            in_specs=[
                pl.BlockSpec((bt, D), lambda b: (b, 0)),       # x rows (lane-dense)
                pl.BlockSpec((D, 2 * D), lambda b: (0, 0)),    # fused [w_big | w_big@m_avg]
                pl.BlockSpec((D, D), lambda b: (0, 0)),        # averaging matrix
                pl.BlockSpec((1, 2 * D), lambda b: (0, 0)),    # fused bias
                pl.BlockSpec((1, D), lambda b: (0, 0)),        # alpha
                pl.BlockSpec((1, D), lambda b: (0, 0)),        # beta
            ],
            out_specs=pl.BlockSpec((bt, D), lambda b: (b, 0)),
        ),
        compiler_params=pltpu.CompilerParams(
            dimension_semantics=("parallel",),                 # megacore-shardable
            vmem_limit_bytes=30 * 1024 * 1024,                 # safe on v5e/v6e/v7x
        ),
    )(x_flat, params["w2"], params["m_avg"], params["bias2"],
      params["alpha"], params["beta"])

    return out_flat[:B].reshape(B, P, S)


def mlp_block(x, w, bias, alpha, beta):
    """Convenience one-shot wrapper (prepare + apply)."""
    _, P, S = x.shape
    return mlp_block_apply(x, prepare_params(w, bias, alpha, beta, P, S))


# --------------------------------------------------------------------------- #
# Pure-JAX reference of the PyTorch forward pass.
# --------------------------------------------------------------------------- #
def reference(x, w, bias, alpha, beta):
    y = jnp.einsum("bps,os->bpo", x, w) + bias                 # TemporalFC on last axis
    mean = jnp.mean(y, axis=1, keepdims=True)
    var = jnp.mean((y - mean) ** 2, axis=1, keepdims=True)
    y = (y - mean) / jnp.sqrt(var + EPSILON)
    y = y * alpha + beta
    return x + y


if __name__ == "__main__":
    # Small shapes: batch=2, in_points_dims=16, in_sequence_size=8  (P*S = 128)
    B, P, S = 2, 16, 8

    key = jax.random.PRNGKey(0)
    kx, kw = jax.random.split(key)

    x = jax.random.normal(kx, (B, P, S), dtype=jnp.float32)

    # reset_parameters(): xavier_uniform_(weight, gain=1e-8), bias = 0
    fan_in = fan_out = S
    bound = 1e-8 * np.sqrt(6.0 / (fan_in + fan_out))
    w = jax.random.uniform(kw, (S, S), minval=-bound, maxval=bound, dtype=jnp.float32)
    bias = jnp.zeros((S,), dtype=jnp.float32)

    # CustomLayerNorm(axis=1) params: alpha=ones, beta=zeros, shape (1, P, 1)
    alpha = jnp.ones((1, P, 1), dtype=jnp.float32)
    beta = jnp.zeros((1, P, 1), dtype=jnp.float32)

    # Weight-only precompute hoisted out of the per-call path.
    params = prepare_params(w, bias, alpha, beta, P, S)

    out = jax.block_until_ready(mlp_block_apply(x, params))

    ref = reference(x, w, bias, alpha, beta)
    np.testing.assert_allclose(np.asarray(out), np.asarray(ref), rtol=1e-5, atol=1e-5)

    print("KERNEL_OK")
</pallas_src>

<mosaic_0001>
module attributes {stable_mosaic.version = 11 : i64} {
  func.func @mlp_block_kernel(%arg0: i32, %arg1: memref<8x128xf32, #tpu.memory_space<vmem>>, %arg2: memref<128x256xf32, #tpu.memory_space<vmem>>, %arg3: memref<128x128xf32, #tpu.memory_space<vmem>>, %arg4: memref<1x256xf32, #tpu.memory_space<vmem>>, %arg5: memref<1x128xf32, #tpu.memory_space<vmem>>, %arg6: memref<1x128xf32, #tpu.memory_space<vmem>>, %arg7: memref<8x128xf32, #tpu.memory_space<vmem>>) attributes {dimension_semantics = [#tpu.dimension_semantics<parallel>], iteration_bounds = array<i64: 1>, scalar_prefetch = 0 : i64, scratch_operands = 0 : i64, tpu.core_type = #tpu.core_type<tc>, window_params = [{transform_indices = @transform_0, window_bounds = array<i64: 8, 128>}, {pipeline_mode = #tpu.pipeline_mode<synchronous>, transform_indices = @transform_1, window_bounds = array<i64: 128, 256>}, {pipeline_mode = #tpu.pipeline_mode<synchronous>, transform_indices = @transform_2, window_bounds = array<i64: 128, 128>}, {pipeline_mode = #tpu.pipeline_mode<synchronous>, transform_indices = @transform_3, window_bounds = array<i64: 1, 256>}, {pipeline_mode = #tpu.pipeline_mode<synchronous>, transform_indices = @transform_4, window_bounds = array<i64: 1, 128>}, {pipeline_mode = #tpu.pipeline_mode<synchronous>, transform_indices = @transform_5, window_bounds = array<i64: 1, 128>}, {transform_indices = @transform_6, window_bounds = array<i64: 8, 128>}]} {
    %c0 = arith.constant 0 : index
    %c0_0 = arith.constant 0 : index
    %0 = vector.load %arg1[%c0, %c0_0] : memref<8x128xf32, #tpu.memory_space<vmem>>, vector<8x128xf32>
    %c0_1 = arith.constant 0 : index
    %c0_2 = arith.constant 0 : index
    %1 = vector.load %arg2[%c0_1, %c0_2] : memref<128x256xf32, #tpu.memory_space<vmem>>, vector<128x256xf32>
    %cst = arith.constant dense<0.000000e+00> : vector<8x256xf32>
    %2 = tpu.matmul %0, %1, %cst {dimension_numbers = #tpu.dot_dimension_numbers<[1], [0], [0], [1], [0, 0, 1, 1], [], []>} : vector<8x128xf32>, vector<128x256xf32>, vector<8x256xf32> -> vector<8x256xf32>
    %c0_3 = arith.constant 0 : index
    %c0_4 = arith.constant 0 : index
    %3 = vector.load %arg4[%c0_3, %c0_4] : memref<1x256xf32, #tpu.memory_space<vmem>>, vector<1x256xf32>
    %4 = vector.broadcast %3 : vector<1x256xf32> to vector<8x256xf32>
    %5 = arith.addf %2, %4 : vector<8x256xf32>
    %6 = vector.extract_strided_slice %5 {offsets = [0, 0], sizes = [8, 128], strides = [1, 1]} : vector<8x256xf32> to vector<8x128xf32>
    %7 = vector.extract_strided_slice %5 {offsets = [0, 128], sizes = [8, 128], strides = [1, 1]} : vector<8x256xf32> to vector<8x128xf32>
    %8 = arith.subf %6, %7 : vector<8x128xf32>
    %9 = arith.mulf %8, %8 : vector<8x128xf32>
    %c0_5 = arith.constant 0 : index
    %c0_6 = arith.constant 0 : index
    %10 = vector.load %arg3[%c0_5, %c0_6] : memref<128x128xf32, #tpu.memory_space<vmem>>, vector<128x128xf32>
    %cst_7 = arith.constant dense<0.000000e+00> : vector<8x128xf32>
    %11 = tpu.matmul %9, %10, %cst_7 {dimension_numbers = #tpu.dot_dimension_numbers<[1], [0], [0], [1], [0, 0, 1, 1], [], []>} : vector<8x128xf32>, vector<128x128xf32>, vector<8x128xf32> -> vector<8x128xf32>
    %cst_8 = arith.constant 9.99999974E-6 : f32
    %12 = vector.broadcast %cst_8 : f32 to vector<8x128xf32>
    %13 = arith.addf %11, %12 : vector<8x128xf32>
    %14 = math.rsqrt %13 : vector<8x128xf32>
    %15 = arith.mulf %8, %14 : vector<8x128xf32>
    %c0_9 = arith.constant 0 : index
    %c0_10 = arith.constant 0 : index
    %16 = vector.load %arg5[%c0_9, %c0_10] : memref<1x128xf32, #tpu.memory_space<vmem>>, vector<1x128xf32>
    %17 = vector.broadcast %16 : vector<1x128xf32> to vector<8x128xf32>
    %18 = arith.mulf %15, %17 : vector<8x128xf32>
    %c0_11 = arith.constant 0 : index
    %c0_12 = arith.constant 0 : index
    %19 = vector.load %arg6[%c0_11, %c0_12] : memref<1x128xf32, #tpu.memory_space<vmem>>, vector<1x128xf32>
    %20 = vector.broadcast %19 : vector<1x128xf32> to vector<8x128xf32>
    %21 = arith.addf %18, %20 : vector<8x128xf32>
    %22 = arith.addf %0, %21 : vector<8x128xf32>
    %c0_13 = arith.constant 0 : index
    %c0_14 = arith.constant 0 : index
    %23 = vector.load %arg7[%c0_13, %c0_14] : memref<8x128xf32, #tpu.memory_space<vmem>>, vector<8x128xf32>
    tpu.vector_store %arg7[%c0_13, %c0_14], %22 {strides = array<i32>} : memref<8x128xf32, #tpu.memory_space<vmem>>, vector<8x128xf32>,
    return
  }
  func.func @transform_0(%arg0: i32) -> (i32, i32) {
    %c0_i32 = arith.constant 0 : i32
    %c0_i32_0 = arith.constant 0 : i32
    return %arg0, %c0_i32 : i32, i32
  }
  func.func @transform_1(%arg0: i32) -> (i32, i32) {
    %c0_i32 = arith.constant 0 : i32
    %c0_i32_0 = arith.constant 0 : i32
    %c0_i32_1 = arith.constant 0 : i32
    return %c0_i32, %c0_i32_0 : i32, i32
  }
  func.func @transform_2(%arg0: i32) -> (i32, i32) {
    %c0_i32 = arith.constant 0 : i32
    %c0_i32_0 = arith.constant 0 : i32
    %c0_i32_1 = arith.constant 0 : i32
    return %c0_i32, %c0_i32_0 : i32, i32
  }
  func.func @transform_3(%arg0: i32) -> (i32, i32) {
    %c0_i32 = arith.constant 0 : i32
    %c0_i32_0 = arith.constant 0 : i32
    %c0_i32_1 = arith.constant 0 : i32
    return %c0_i32, %c0_i32_0 : i32, i32
  }
  func.func @transform_4(%arg0: i32) -> (i32, i32) {
    %c0_i32 = arith.constant 0 : i32
    %c0_i32_0 = arith.constant 0 : i32
    %c0_i32_1 = arith.constant 0 : i32
    return %c0_i32, %c0_i32_0 : i32, i32
  }
  func.func @transform_5(%arg0: i32) -> (i32, i32) {
    %c0_i32 = arith.constant 0 : i32
    %c0_i32_0 = arith.constant 0 : i32
    %c0_i32_1 = arith.constant 0 : i32
    return %c0_i32, %c0_i32_0 : i32, i32
  }
  func.func @transform_6(%arg0: i32) -> (i32, i32) {
    %c0_i32 = arith.constant 0 : i32
    %c0_i32_0 = arith.constant 0 : i32
    return %arg0, %c0_i32 : i32, i32
  }
}

</mosaic_0001>

<llo_original>
// kernel: mlp_block_apply.1
$region0: #{mlp_block_apply.1}
  #allocation0 [shape = 'u32[]', space=smem, size = 0x4, offset = 0x4, fixed_abs, tag = 'smem constant byte address 0x4 - core index']
  #allocation1 [shape = 'u32[144,128]{1,0:T(1,128)}', space=vmem, size = 0x12000, scoped, tag = 'internal scratch']
  %s0 = inlined_call_operand.vmem [shape: f32[8,128], index: 0, kind: input, shape index: {}]
  %s1 = inlined_call_operand.hbm [shape: f32[128,256], index: 1, kind: input, shape index: {}]
  %s2 = inlined_call_operand.hbm [shape: f32[128,128], index: 2, kind: input, shape index: {}]
  %s3 = inlined_call_operand.vmem [shape: f32[1,256], index: 3, kind: input, shape index: {}]
  %s4 = inlined_call_operand.vmem [shape: f32[1,128], index: 4, kind: input, shape index: {}]
  %s5 = inlined_call_operand.vmem [shape: f32[1,128], index: 5, kind: input, shape index: {}]
  %s6 = inlined_call_operand.vmem [shape: f32[8,128], index: 6, kind: output, shape index: {}]
  %s7 = sld [smem:[#allocation0]]
  $region42: #{mlp_block_apply.1} parent=0
    _
  %s9 = ssub.s32 1, %s7
  %s10 = scalar_select 0, %s9, %s7
  $region1: #{mlp_block_apply.1} parent=0
    #allocation2 [shape = 'u8[131072]{0}', space=vmem, size = 0x20000, scoped, tag = 'input window, operand 1, single buffered']
    #allocation3 [shape = 's32[1]{0}', space=sflag, size = 0x4, scoped, tag = 'scoped memory for mlp_block_apply.1']
    #allocation4 [shape = 'u8[65536]{0}', space=vmem, size = 0x10000, scoped, tag = 'input window, operand 2, single buffered']
    #allocation5 [shape = 's32[1]{0}', space=sflag, size = 0x4, scoped, tag = 'scoped memory for mlp_block_apply.1']
    %11 = vsyncpa [#allocation3], 0
    %12 = vsyncpa [#allocation5], 0
    // Predicated region
    $region2: #{mlp_block_apply.1} parent=1 // pred_check
      _
    $region3: #{mlp_block_apply.1} parent=1 // pred_check_branch
      %14 = sbr.rel (0) target = $region5
    $region4: #{mlp_block_apply.1} parent=1 // pred_region
      _
    $region5: #{mlp_block_apply.1} parent=1 // pred_fallthru
      _
    // Predicated region
    $region6: #{mlp_block_apply.1} parent=1 // pred_check
      _
    $region7: #{mlp_block_apply.1} parent=1 // pred_check_branch
      %16 = sbr.rel (0) target = $region9
    $region8: #{mlp_block_apply.1} parent=1 // pred_region
      %s18 = ssub.s32 4096, 4096
      %19 = vsyncadd [#allocation3], %s18
      %s20 = sshll.u32 [#allocation2], 4
      %s21 = int_to_ptr.vmem [resolvable:$true] %s20
      %26 = dma.hbm_to_vmem [thread:$0]  %s1, 4096, %s21, [#allocation3], 256, 256, 16
    $region9: #{mlp_block_apply.1} parent=1 // pred_fallthru
      _
    // Predicated region
    $region10: #{mlp_block_apply.1} parent=1 // pred_check
      _
    $region11: #{mlp_block_apply.1} parent=1 // pred_check_branch
      %28 = sbr.rel (0) target = $region13
    $region12: #{mlp_block_apply.1} parent=1 // pred_region
      %s30 = ssub.s32 2048, 2048
      %31 = vsyncadd [#allocation5], %s30
      %s32 = sshll.u32 [#allocation4], 4
      %s33 = int_to_ptr.vmem [resolvable:$true] %s32
      %38 = dma.hbm_to_vmem [thread:$0]  %s2, 2048, %s33, [#allocation5], 128, 128, 8
    $region13: #{mlp_block_apply.1} parent=1 // pred_fallthru
      _
    // Predicated region
    $region14: #{mlp_block_apply.1} parent=1 // pred_check
      _
    $region15: #{mlp_block_apply.1} parent=1 // pred_check_branch
      %40 = sbr.rel (0) target = $region17
    $region16: #{mlp_block_apply.1} parent=1 // pred_region
      _
    $region17: #{mlp_block_apply.1} parent=1 // pred_fallthru
      _
    // Predicated region
    $region18: #{mlp_block_apply.1} parent=1 // pred_check
      _
    $region19: #{mlp_block_apply.1} parent=1 // pred_check_branch
      %42 = sbr.rel (0) target = $region21
    $region20: #{mlp_block_apply.1} parent=1 // pred_region
      _
    $region21: #{mlp_block_apply.1} parent=1 // pred_fallthru
      _
    // Predicated region
    $region22: #{mlp_block_apply.1} parent=1 // pred_check
      _
    $region23: #{mlp_block_apply.1} parent=1 // pred_check_branch
      %44 = sbr.rel (0) target = $region25
    $region24: #{mlp_block_apply.1} parent=1 // pred_region
      _
    $region25: #{mlp_block_apply.1} parent=1 // pred_fallthru
      _
    // Predicated region
    $region26: #{mlp_block_apply.1} parent=1 // pred_check
      _
    $region27: #{mlp_block_apply.1} parent=1 // pred_check_branch
      %46 = sbr.rel (0) target = $region29
    $region28: #{mlp_block_apply.1} parent=1 // pred_region
      %47 = dma.done [#allocation3], 4096
    $region29: #{mlp_block_apply.1} parent=1 // pred_fallthru
      _
    // Predicated region
    $region30: #{mlp_block_apply.1} parent=1 // pred_check
      _
    $region31: #{mlp_block_apply.1} parent=1 // pred_check_branch
      %49 = sbr.rel (0) target = $region33
    $region32: #{mlp_block_apply.1} parent=1 // pred_region
      %50 = dma.done [#allocation5], 2048
    $region33: #{mlp_block_apply.1} parent=1 // pred_fallthru
      _
    %v51 = vld [vmem:[%s0] sm:$0xff]
    %v52 = vld [vmem:[#allocation2] sm:$0xff]
    %v53 = vld [vmem:[#allocation2 + $0x8] sm:$0xff]
    %v54 = vld [vmem:[#allocation2 + $0x10] sm:$0xff]
    %v55 = vld [vmem:[#allocation2 + $0x18] sm:$0xff]
    %v56 = vld [vmem:[#allocation2 + $0x20] sm:$0xff]
    %v57 = vld [vmem:[#allocation2 + $0x28] sm:$0xff]
    %v58 = vld [vmem:[#allocation2 + $0x30] sm:$0xff]
    %v59 = vld [vmem:[#allocation2 + $0x38] sm:$0xff]
    %v60 = vld [vmem:[#allocation2 + $0x40] sm:$0xff]
    %v61 = vld [vmem:[#allocation2 + $0x48] sm:$0xff]
    %v62 = vld [vmem:[#allocation2 + $0x50] sm:$0xff]
    %v63 = vld [vmem:[#allocation2 + $0x58] sm:$0xff]
    %v64 = vld [vmem:[#allocation2 + $0x60] sm:$0xff]
    %v65 = vld [vmem:[#allocation2 + $0x68] sm:$0xff]
    %v66 = vld [vmem:[#allocation2 + $0x70] sm:$0xff]
    %v67 = vld [vmem:[#allocation2 + $0x78] sm:$0xff]
    %v68 = vld [vmem:[#allocation2 + $0x80] sm:$0xff]
    %v69 = vld [vmem:[#allocation2 + $0x88] sm:$0xff]
    %v70 = vld [vmem:[#allocation2 + $0x90] sm:$0xff]
    %v71 = vld [vmem:[#allocation2 + $0x98] sm:$0xff]
    %v72 = vld [vmem:[#allocation2 + $0xa0] sm:$0xff]
    %v73 = vld [vmem:[#allocation2 + $0xa8] sm:$0xff]
    %v74 = vld [vmem:[#allocation2 + $0xb0] sm:$0xff]
    %v75 = vld [vmem:[#allocation2 + $0xb8] sm:$0xff]
    %v76 = vld [vmem:[#allocation2 + $0xc0] sm:$0xff]
    %v77 = vld [vmem:[#allocation2 + $0xc8] sm:$0xff]
    %v78 = vld [vmem:[#allocation2 + $0xd0] sm:$0xff]
    %v79 = vld [vmem:[#allocation2 + $0xd8] sm:$0xff]
    %v80 = vld [vmem:[#allocation2 + $0xe0] sm:$0xff]
    %v81 = vld [vmem:[#allocation2 + $0xe8] sm:$0xff]
    %v82 = vld [vmem:[#allocation2 + $0xf0] sm:$0xff]
    %v83 = vld [vmem:[#allocation2 + $0xf8] sm:$0xff]
    %v84 = vld [vmem:[%s3] sm:$0x3]
    %v86 = vlaneseq
    %v87 = vshrl.u32 %v86, 7
    %v88 = vsub.s32 0, %v87
    %v89 = vrot.slane %v84, %v88
    %v90 = vlaneseq
    %v91 = vshrl.u32 %v90, 7
    %v92 = vsub.s32 1, %v91
    %v93 = vrot.slane %v84, %v92
    %96 = vmatprep.subr.mxu0 %v83
    %97 = vmatpush1.msra.mxu0 %v82
    %98 = vmatprep.subr.mxu0 %v81
    %99 = vmatpush1.msra.mxu0 %v80
    %100 = vmatprep.subr.mxu0 %v79
    %101 = vmatpush1.msra.mxu0 %v78
    %102 = vmatprep.subr.mxu0 %v77
    %103 = vmatpush1.msra.mxu0 %v76
    %104 = vmatprep.subr.mxu0 %v75
    %105 = vmatpush1.msra.mxu0 %v74
    %106 = vmatprep.subr.mxu0 %v73
    %107 = vmatpush1.msra.mxu0 %v72
    %108 = vmatprep.subr.mxu0 %v71
    %109 = vmatpush1.msra.mxu0 %v70
    %110 = vmatprep.subr.mxu0 %v69
    %111 = vmatpush1.msra.mxu0 %v68
    %112 = vmatprep.subr.mxu0 %v67
    %113 = vmatpush1.msra.mxu0 %v66
    %114 = vmatprep.subr.mxu0 %v65
    %115 = vmatpush1.msra.mxu0 %v64
    %116 = vmatprep.subr.mxu0 %v63
    %117 = vmatpush1.msra.mxu0 %v62
    %118 = vmatprep.subr.mxu0 %v61
    %119 = vmatpush1.msra.mxu0 %v60
    %120 = vmatprep.subr.mxu0 %v59
    %121 = vmatpush1.msra.mxu0 %v58
    %122 = vmatprep.subr.mxu0 %v57
    %123 = vmatpush1.msra.mxu0 %v56
    %124 = vmatprep.subr.mxu0 %v55
    %125 = vmatpush1.msra.mxu0 %v54
    %126 = vmatprep.subr.mxu0 %v53
    %127 = vmatpush1.msra.mxu0 %v52
    %128 = vmatprep.subr.mxu0 0.0
    %129 = vmatpush2.msra.mxu0 0.0
    %130 = vmatprep.subr.mxu0 0.0
    %131 = vmatpush2.msra.mxu0 0.0
    %132 = vmatprep.subr.mxu0 0.0
    %133 = vmatpush2.msra.mxu0 0.0
    %134 = vmatprep.subr.mxu0 0.0
    %135 = vmatpush2.msra.mxu0 0.0
    %136 = vmatprep.subr.mxu0 0.0
    %137 = vmatpush2.msra.mxu0 0.0
    %138 = vmatprep.subr.mxu0 0.0
    %139 = vmatpush2.msra.mxu0 0.0
    %140 = vmatprep.subr.mxu0 0.0
    %141 = vmatpush2.msra.mxu0 0.0
    %142 = vmatprep.subr.mxu0 0.0
    %143 = vmatpush2.msra.mxu0 0.0
    %144 = vmatprep.subr.mxu0 0.0
    %145 = vmatpush2.msra.mxu0 0.0
    %146 = vmatprep.subr.mxu0 0.0
    %147 = vmatpush2.msra.mxu0 0.0
    %148 = vmatprep.subr.mxu0 0.0
    %149 = vmatpush2.msra.mxu0 0.0
    %150 = vmatprep.subr.mxu0 0.0
    %151 = vmatpush2.msra.mxu0 0.0
    %152 = vmatprep.subr.mxu0 0.0
    %153 = vmatpush2.msra.mxu0 0.0
    %154 = vmatprep.subr.mxu0 0.0
    %155 = vmatpush2.msra.mxu0 0.0
    %156 = vmatprep.subr.mxu0 0.0
    %157 = vmatpush2.msra.mxu0 0.0
    %158 = vmatprep.subr.mxu0 0.0
    %159 = vmatpush2.msra.mxu0 0.0
    %160 = vmatprep.mubr.f32.mxu0 0.0
    %161 = vmatmul.mubr.f32.gmra.mxu0 %v51
    %v162 = vpop.f32.mrf.mxu0
    %v163 = vadd.f32 %v89, %v162
    %v164 = vpop.f32.mrf.mxu0
    %v165 = vadd.f32 %v93, %v164
    %166 = vdwg.mxu0
    %v167 = vsub.f32 %v163, %v165
    %v168 = vmul.f32 %v167, %v167
    %v169 = vld [vmem:[#allocation4] sm:$0xff]
    %v170 = vld [vmem:[#allocation4 + $0x8] sm:$0xff]
    %v171 = vld [vmem:[#allocation4 + $0x10] sm:$0xff]
    %v172 = vld [vmem:[#allocation4 + $0x18] sm:$0xff]
    %v173 = vld [vmem:[#allocation4 + $0x20] sm:$0xff]
    %v174 = vld [vmem:[#allocation4 + $0x28] sm:$0xff]
    %v175 = vld [vmem:[#allocation4 + $0x30] sm:$0xff]
    %v176 = vld [vmem:[#allocation4 + $0x38] sm:$0xff]
    %v177 = vld [vmem:[#allocation4 + $0x40] sm:$0xff]
    %v178 = vld [vmem:[#allocation4 + $0x48] sm:$0xff]
    %v179 = vld [vmem:[#allocation4 + $0x50] sm:$0xff]
    %v180 = vld [vmem:[#allocation4 + $0x58] sm:$0xff]
    %v181 = vld [vmem:[#allocation4 + $0x60] sm:$0xff]
    %v182 = vld [vmem:[#allocation4 + $0x68] sm:$0xff]
    %v183 = vld [vmem:[#allocation4 + $0x70] sm:$0xff]
    %v184 = vld [vmem:[#allocation4 + $0x78] sm:$0xff]
    %185 = vmatprep.subr.mxu0 0.0
    %186 = vmatpush1.msra.mxu0 %v184
    %187 = vmatprep.subr.mxu0 0.0
    %188 = vmatpush1.msra.mxu0 %v183
    %189 = vmatprep.subr.mxu0 0.0
    %190 = vmatpush1.msra.mxu0 %v182
    %191 = vmatprep.subr.mxu0 0.0
    %192 = vmatpush1.msra.mxu0 %v181
    %193 = vmatprep.subr.mxu0 0.0
    %194 = vmatpush1.msra.mxu0 %v180
    %195 = vmatprep.subr.mxu0 0.0
    %196 = vmatpush1.msra.mxu0 %v179
    %197 = vmatprep.subr.mxu0 0.0
    %198 = vmatpush1.msra.mxu0 %v178
    %199 = vmatprep.subr.mxu0 0.0
    %200 = vmatpush1.msra.mxu0 %v177
    %201 = vmatprep.subr.mxu0 0.0
    %202 = vmatpush1.msra.mxu0 %v176
    %203 = vmatprep.subr.mxu0 0.0
    %204 = vmatpush1.msra.mxu0 %v175
    %205 = vmatprep.subr.mxu0 0.0
    %206 = vmatpush1.msra.mxu0 %v174
    %207 = vmatprep.subr.mxu0 0.0
    %208 = vmatpush1.msra.mxu0 %v173
    %209 = vmatprep.subr.mxu0 0.0
    %210 = vmatpush1.msra.mxu0 %v172
    %211 = vmatprep.subr.mxu0 0.0
    %212 = vmatpush1.msra.mxu0 %v171
    %213 = vmatprep.subr.mxu0 0.0
    %214 = vmatpush1.msra.mxu0 %v170
    %215 = vmatprep.subr.mxu0 0.0
    %216 = vmatpush1.msra.mxu0 %v169
    %217 = vmatprep.subr.mxu0 0.0
    %218 = vmatpush2.msra.mxu0 0.0
    %219 = vmatprep.subr.mxu0 0.0
    %220 = vmatpush2.msra.mxu0 0.0
    %221 = vmatprep.subr.mxu0 0.0
    %222 = vmatpush2.msra.mxu0 0.0
    %223 = vmatprep.subr.mxu0 0.0
    %224 = vmatpush2.msra.mxu0 0.0
    %225 = vmatprep.subr.mxu0 0.0
    %226 = vmatpush2.msra.mxu0 0.0
    %227 = vmatprep.subr.mxu0 0.0
    %228 = vmatpush2.msra.mxu0 0.0
    %229 = vmatprep.subr.mxu0 0.0
    %230 = vmatpush2.msra.mxu0 0.0
    %231 = vmatprep.subr.mxu0 0.0
    %232 = vmatpush2.msra.mxu0 0.0
    %233 = vmatprep.subr.mxu0 0.0
    %234 = vmatpush2.msra.mxu0 0.0
    %235 = vmatprep.subr.mxu0 0.0
    %236 = vmatpush2.msra.mxu0 0.0
    %237 = vmatprep.subr.mxu0 0.0
    %238 = vmatpush2.msra.mxu0 0.0
    %239 = vmatprep.subr.mxu0 0.0
    %240 = vmatpush2.msra.mxu0 0.0
    %241 = vmatprep.subr.mxu0 0.0
    %242 = vmatpush2.msra.mxu0 0.0
    %243 = vmatprep.subr.mxu0 0.0
    %244 = vmatpush2.msra.mxu0 0.0
    %245 = vmatprep.subr.mxu0 0.0
    %246 = vmatpush2.msra.mxu0 0.0
    %247 = vmatprep.subr.mxu0 0.0
    %248 = vmatpush2.msra.mxu0 0.0
    %249 = vmatprep.mubr.f32.mxu0 0.0
    %250 = vmatmul.mubr.f32.gmra.mxu0 %v168
    %v251 = vpop.f32.mrf.mxu0
    %v252 = vadd.f32 1e-05, %v251
    %v253 = vpop.f32.mrf.mxu0
    %254 = vdwg.mxu0
    %v255 = vrsqrt.pop %v252
    %v256 = vmul.f32 %v167, %v255
    %v257 = vld [vmem:[%s4] sm:$0x1]
    %v259 = vlaneseq
    %v260 = vshrl.u32 %v259, 7
    %v261 = vsub.s32 0, %v260
    %v262 = vrot.slane %v257, %v261
    %v264 = vmul.f32 %v256, %v262
    %v265 = vld [vmem:[%s5] sm:$0x1]
    %v267 = vlaneseq
    %v268 = vshrl.u32 %v267, 7
    %v269 = vsub.s32 0, %v268
    %v270 = vrot.slane %v265, %v269
    %v272 = vadd.f32 %v264, %v270
    %v273 = vadd.f32 %v51, %v272
    %274 = vst [vmem:[%s6] sm:$0xff] %v273
    // Predicated region
    $region34: #{mlp_block_apply.1} parent=1 // pred_check
      _
    $region35: #{mlp_block_apply.1} parent=1 // pred_check_branch
      %276 = sbr.rel (0) target = $region37
    $region36: #{mlp_block_apply.1} parent=1 // pred_region
      _
    $region37: #{mlp_block_apply.1} parent=1 // pred_fallthru
      _
    // Predicated region
    $region38: #{mlp_block_apply.1} parent=1 // pred_check
      _
    $region39: #{mlp_block_apply.1} parent=1 // pred_check_branch
      %278 = sbr.rel (0) target = $region41
    $region40: #{mlp_block_apply.1} parent=1 // pred_region
      _
    $region41: #{mlp_block_apply.1} parent=1 // pred_fallthru
      _
    %279 = vsyncpa [#allocation3], 1
    %280 = vsyncpa [#allocation5], 1

</llo_original>
